<compile_context>
chip_gen: v6e
topology: v6e:2x2x1
jax: 0.10.0
libtpu: 0.0.40
codegen_flags: <defaults>
</compile_context>

<pallas_src>
import functools

import numpy as np
import jax
import jax.numpy as jnp
from jax.experimental import pallas as pl
from jax.experimental.pallas import tpu as pltpu

LANE = 128                         # lane width; hdim (= 2H + D) must be <= LANE
ROW_SENTINEL = np.int32(2 ** 30)   # padded edges never match any node row


def _pick_tiles():
    """256x256 tiles on v6e/v7x (256-wide MXU), 128x128 elsewhere (v5e and older)."""
    try:
        kind = jax.devices()[0].device_kind.lower()
    except Exception:
        kind = ""
    if ("v6" in kind) or ("v7" in kind):
        return 256, 256
    return 128, 128


def exposure_kernel(eblk_lo_ref, n_eblk_ref,            # scalar-prefetch (SMEM)
                    slab_ref, t_ref, row_ref, iota_ref,  # inputs (VMEM tiles)
                    out_ref,                             # output (VMEM tile)
                    num_ref, den_ref,                    # scratch (VMEM accumulators)
                    *, tile_n):
    i = pl.program_id(0)          # node block
    j = pl.program_id(1)          # edge sub-block within this node block's edge range

    @pl.when(j == 0)
    def _init():
        num_ref[...] = jnp.zeros_like(num_ref)
        den_ref[...] = jnp.zeros_like(den_ref)

    # Skip the clamped repeat iterations (j beyond this node block's real edge-block count).
    @pl.when(j < n_eblk_ref[i])
    def _accumulate():
        v = slab_ref[...]                                   # (TILE_E, LANE)  [ea2 | x_j | sim | 0]
        row_local = row_ref[...] - i * tile_n               # (1, TILE_E) int32
        # One-hot segment-sum restricted to this node block (edges are row-sorted);
        # foreign / padded edges fall outside [0, TILE_N) and contribute zero.
        onehot = (iota_ref[...] == row_local).astype(jnp.float32)      # (TILE_N, TILE_E)
        onehot_t = onehot * t_ref[...]                                  # column-scale by t[col]
        num_ref[...] += jnp.dot(onehot_t, v, preferred_element_type=jnp.float32)
        den_ref[...] += jnp.dot(onehot, v, preferred_element_type=jnp.float32)

    @pl.when(j == pl.num_programs(1) - 1)
    def _finalize():
        out_ref[...] = num_ref[...] * pl.reciprocal(den_ref[...] + 1e-8, approx=False)


def vanilla_heterogeneous_exposure(x, t, AA, edge_attrs, row, col, w, b):
    """x: (N,H) f32, t: (N,) f32, AA: (N,N) f32, edge_attrs: (E, edge_dim) f32,
    row/col: (E,) int32 (coo of A^T; will be re-sorted by row), w: (D,D), b: (D,)."""
    x = jnp.asarray(x, jnp.float32)
    t = jnp.asarray(t, jnp.float32)
    AA = jnp.asarray(AA, jnp.float32)
    edge_attrs = jnp.asarray(edge_attrs, jnp.float32)
    w = jnp.asarray(w, jnp.float32)
    b = jnp.asarray(b, jnp.float32)

    tile_n, tile_e = _pick_tiles()

    n, h = x.shape
    d = edge_attrs.shape[1] + 1
    hdim = 2 * h + d
    assert hdim <= LANE, "hdim must fit in one 128-lane tile"

    # ---- host glue: sort edges by destination row, build per-node-block edge-block ranges ----
    row_np = np.asarray(row, np.int32).reshape(-1)
    col_np = np.asarray(col, np.int32).reshape(-1)
    e = int(row_np.shape[0])
    perm = np.argsort(row_np, kind="stable")
    row_np, col_np = row_np[perm], col_np[perm]
    edge_attrs = edge_attrs[jnp.asarray(perm)]

    num_eblocks = max(1, int(pl.cdiv(max(e, 1), tile_e)))
    e_pad = num_eblocks * tile_e
    num_nblocks = max(1, int(pl.cdiv(n, tile_n)))
    n_pad = num_nblocks * tile_n

    eblk_lo = np.zeros((num_nblocks,), np.int32)
    n_eblk = np.zeros((num_nblocks,), np.int32)
    for i in range(num_nblocks):
        lo = int(np.searchsorted(row_np, i * tile_n, side="left"))
        hi = int(np.searchsorted(row_np, (i + 1) * tile_n, side="left"))
        if hi > lo:
            b0 = lo // tile_e
            b1 = (hi - 1) // tile_e + 1
            eblk_lo[i] = b0
            n_eblk[i] = b1 - b0
    max_eblk = max(1, int(n_eblk.max()))

    # ---- XLA glue: per-edge features (edge-emb Linear, residual relu, sim) + lane-dense slab ---
    row_j = jnp.asarray(row_np)
    col_j = jnp.asarray(col_np)
    aa = AA[row_j, col_j]                                             # (E,)
    ea = jnp.concatenate([edge_attrs, aa[:, None]], axis=1)           # (E, D)
    ea2 = ea + jax.nn.relu(ea @ w.T + b)                              # tiny E x D x D matmul
    x_i = x[row_j]                                                    # (E, H)
    x_j = x[col_j]                                                    # (E, H)
    sim = jnp.exp(-((x_j - x_i) ** 2))                                # E*H exps (not E*128)
    core = jnp.concatenate([ea2, x_j, sim], axis=1)                   # (E, hdim)

    slab = jnp.zeros((e_pad, LANE), jnp.float32).at[:e, :hdim].set(core)
    t_row = jnp.zeros((1, e_pad), jnp.float32).at[0, :e].set(t[col_j])
    row2d = jnp.full((1, e_pad), ROW_SENTINEL, jnp.int32).at[0, :e].set(row_j)
    iota_col = jnp.arange(tile_n, dtype=jnp.int32).reshape(tile_n, 1)  # grid-invariant iota

    # ---- grid / BlockSpecs (scalar-prefetched edge-block ranges drive edge-side index maps) ----
    def edge_blk(i, j, lo_ref, nb_ref):
        last = jnp.maximum(nb_ref[i], 1) - 1
        return jnp.minimum(lo_ref[i] + jnp.minimum(j, last), num_eblocks - 1)

    grid_spec = pltpu.PrefetchScalarGridSpec(
        num_scalar_prefetch=2,
        grid=(num_nblocks, max_eblk),
        in_specs=[
            pl.BlockSpec((tile_e, LANE), lambda i, j, lo, nb: (edge_blk(i, j, lo, nb), 0)),
            pl.BlockSpec((1, tile_e), lambda i, j, lo, nb: (0, edge_blk(i, j, lo, nb))),
            pl.BlockSpec((1, tile_e), lambda i, j, lo, nb: (0, edge_blk(i, j, lo, nb))),
            pl.BlockSpec((tile_n, 1), lambda i, j, lo, nb: (0, 0)),   # resident iota
        ],
        out_specs=pl.BlockSpec((tile_n, LANE), lambda i, j, lo, nb: (i, 0)),
        scratch_shapes=[pltpu.VMEM((tile_n, LANE), jnp.float32),
                        pltpu.VMEM((tile_n, LANE), jnp.float32)],
    )

    steps = num_nblocks * max_eblk
    cost = pl.CostEstimate(
        flops=int(4 * steps * tile_n * tile_e * LANE),      # two (TILE_N,TILE_E)x(TILE_E,LANE) dots
        transcendentals=0,
        bytes_accessed=int(4 * (slab.size + t_row.size + row2d.size + iota_col.size
                                + n_pad * LANE)),
    )

    kernel = functools.partial(exposure_kernel, tile_n=tile_n)
    out_padded = pl.pallas_call(
        kernel,
        out_shape=jax.ShapeDtypeStruct((n_pad, LANE), jnp.float32),
        grid_spec=grid_spec,
        compiler_params=pltpu.CompilerParams(
            dimension_semantics=("parallel", "arbitrary"),
            vmem_limit_bytes=32 * 1024 * 1024,
        ),
        cost_estimate=cost,
    )(jnp.asarray(eblk_lo), jnp.asarray(n_eblk), slab, t_row, row2d, iota_col)

    return out_padded[:n, :hdim]


def reference(x, t, AA, edge_attrs, row, col, w, b):
    n = x.shape[0]
    aa = AA[row, col]
    ea = jnp.concatenate([edge_attrs, aa[:, None]], axis=1)
    ea2 = ea + jax.nn.relu(ea @ w.T + b)
    x_i, x_j = x[row], x[col]
    sim = jnp.exp(-((x_j - x_i) ** 2))
    v = jnp.concatenate([ea2, x_j, sim], axis=1)
    v_t = v * t[col][:, None]
    num = jax.ops.segment_sum(v_t, row, num_segments=n)
    den = jax.ops.segment_sum(v, row, num_segments=n)
    return num / (den + 1e-8)


if __name__ == "__main__":
    N = 200           # nodes (spans >=2 node blocks when TILE_N=128 -> exercises prefetch path)
    H = 8             # node_hidden
    EDGE_DIM = 3      # edge_dim  -> D = edge_dim + 1 = 4, hdim = 2*H + D = 20
    D = EDGE_DIM + 1

    key = jax.random.PRNGKey(0)
    kx, kt, kaa, ka, ke, kw, kb = jax.random.split(key, 7)

    x = jax.random.normal(kx, (N, H), dtype=jnp.float32)
    t = (jax.random.uniform(kt, (N,)) > 0.5).astype(jnp.float32)     # treatment vector
    AA = jax.random.uniform(kaa, (N, N), dtype=jnp.float32)

    # dense adjacency -> A.nonzero(); SparseTensor(row, col).t().coo()  (host-side glue)
    A_np = np.array(jax.random.uniform(ka, (N, N)) > 0.92).astype(np.float32)
    np.fill_diagonal(A_np, 0.0)
    r0, c0 = np.nonzero(A_np)                      # edges of A (row-major order)
    order = np.lexsort((r0, c0))                   # transpose + sort by new row (= old col)
    row = np.asarray(c0[order], np.int32)          # adj_t row (destination), sorted
    col = np.asarray(r0[order], np.int32)          # adj_t col (source)
    E = int(row.shape[0])

    # per-edge attributes, given in adj_t coo order (same pairing as the torch forward)
    edge_attrs = jax.random.normal(ke, (E, EDGE_DIM), dtype=jnp.float32)

    # edge_emb Linear params (deterministic in-script init; torch.manual_seed(9) analogue)
    w = jax.random.normal(kw, (D, D), dtype=jnp.float32) * (1.0 / np.sqrt(D))
    b = jax.random.normal(kb, (D,), dtype=jnp.float32) * 0.1

    out = vanilla_heterogeneous_exposure(x, t, AA, edge_attrs, row, col, w, b)
    out = jax.block_until_ready(out)

    ref = jax.block_until_ready(
        reference(x, t, AA, edge_attrs, jnp.asarray(row), jnp.asarray(col), w, b))
    np.testing.assert_allclose(np.array(out), np.array(ref), rtol=1e-4, atol=1e-5)

    print("KERNEL_OK")
</pallas_src>

<mosaic_0001>
module attributes {stable_mosaic.version = 11 : i64} {
  func.func @exposure_kernel(%arg0: i32, %arg1: i32, %arg2: memref<2xi32, #tpu.memory_space<smem>>, %arg3: memref<2xi32, #tpu.memory_space<smem>>, %arg4: memref<128x128xf32, #tpu.memory_space<vmem>>, %arg5: memref<1x128xf32, #tpu.memory_space<vmem>>, %arg6: memref<1x128xi32, #tpu.memory_space<vmem>>, %arg7: memref<128x1xi32, #tpu.memory_space<vmem>>, %arg8: memref<128x128xf32, #tpu.memory_space<vmem>>, %arg9: memref<128x128xf32, #tpu.memory_space<vmem>>, %arg10: memref<128x128xf32, #tpu.memory_space<vmem>>) attributes {dimension_semantics = [#tpu.dimension_semantics<parallel>, #tpu.dimension_semantics<arbitrary>], iteration_bounds = array<i64: 2, 16>, scalar_prefetch = 2 : i64, scratch_operands = 2 : i64, tpu.core_type = #tpu.core_type<tc>, window_params = [{transform_indices = @transform_0, window_bounds = array<i64: 128, 128>}, {transform_indices = @transform_1, window_bounds = array<i64: 1, 128>}, {transform_indices = @transform_2, window_bounds = array<i64: 1, 128>}, {pipeline_mode = #tpu.pipeline_mode<synchronous>, transform_indices = @transform_3, window_bounds = array<i64: 128, 1>}, {transform_indices = @transform_4, window_bounds = array<i64: 128, 128>}]} {
    %c0_i32 = arith.constant 0 : i32
    %0 = arith.cmpi eq, %arg1, %c0_i32 : i32
    %1 = arith.extui %0 : i1 to i32
    %c0_i32_0 = arith.constant 0 : i32
    %2 = arith.cmpi ne, %1, %c0_i32_0 : i32
    scf.if %2 {
      %cst = arith.constant 0.000000e+00 : f32
      %11 = vector.broadcast %cst : f32 to vector<128x128xf32>
      %c0 = arith.constant 0 : index
      %c0_3 = arith.constant 0 : index
      %12 = vector.load %arg9[%c0, %c0_3] : memref<128x128xf32, #tpu.memory_space<vmem>>, vector<128x128xf32>
      tpu.vector_store %arg9[%c0, %c0_3], %11 {strides = array<i32>} : memref<128x128xf32, #tpu.memory_space<vmem>>, vector<128x128xf32>,
      %cst_4 = arith.constant 0.000000e+00 : f32
      %13 = vector.broadcast %cst_4 : f32 to vector<128x128xf32>
      %c0_5 = arith.constant 0 : index
      %c0_6 = arith.constant 0 : index
      %14 = vector.load %arg10[%c0_5, %c0_6] : memref<128x128xf32, #tpu.memory_space<vmem>>, vector<128x128xf32>
      tpu.vector_store %arg10[%c0_5, %c0_6], %13 {strides = array<i32>} : memref<128x128xf32, #tpu.memory_space<vmem>>, vector<128x128xf32>,
    } else {
    }
    %3 = arith.index_cast %arg0 : i32 to index
    %4 = memref.load %arg3[%3] : memref<2xi32, #tpu.memory_space<smem>>
    %5 = arith.cmpi slt, %arg1, %4 : i32
    %6 = arith.extui %5 : i1 to i32
    %c0_i32_1 = arith.constant 0 : i32
    %7 = arith.cmpi ne, %6, %c0_i32_1 : i32
    scf.if %7 {
      %c0 = arith.constant 0 : index
      %c0_3 = arith.constant 0 : index
      %11 = vector.load %arg4[%c0, %c0_3] : memref<128x128xf32, #tpu.memory_space<vmem>>, vector<128x128xf32>
      %c0_4 = arith.constant 0 : index
      %c0_5 = arith.constant 0 : index
      %12 = vector.load %arg6[%c0_4, %c0_5] : memref<1x128xi32, #tpu.memory_space<vmem>>, vector<1x128xi32>
      %c128_i32 = arith.constant 128 : i32
      %13 = arith.muli %arg0, %c128_i32 : i32
      %14 = vector.broadcast %13 : i32 to vector<1x128xi32>
      %15 = arith.subi %12, %14 : vector<1x128xi32>
      %c0_6 = arith.constant 0 : index
      %c0_7 = arith.constant 0 : index
      %16 = vector.load %arg7[%c0_6, %c0_7] : memref<128x1xi32, #tpu.memory_space<vmem>>, vector<128x1xi32>
      %17 = vector.broadcast %16 : vector<128x1xi32> to vector<128x128xi32>
      %18 = vector.broadcast %15 : vector<1x128xi32> to vector<128x128xi32>
      %19 = arith.cmpi eq, %17, %18 : vector<128x128xi32>
      %20 = arith.extui %19 : vector<128x128xi1> to vector<128x128xi32>
      %21 = arith.sitofp %20 : vector<128x128xi32> to vector<128x128xf32>
      %c0_8 = arith.constant 0 : index
      %c0_9 = arith.constant 0 : index
      %22 = vector.load %arg5[%c0_8, %c0_9] : memref<1x128xf32, #tpu.memory_space<vmem>>, vector<1x128xf32>
      %23 = vector.broadcast %22 : vector<1x128xf32> to vector<128x128xf32>
      %24 = arith.mulf %21, %23 : vector<128x128xf32>
      %c0_10 = arith.constant 0 : index
      %c0_11 = arith.constant 0 : index
      %25 = vector.load %arg9[%c0_10, %c0_11] : memref<128x128xf32, #tpu.memory_space<vmem>>, vector<128x128xf32>
      %cst = arith.constant dense<0.000000e+00> : vector<128x128xf32>
      %26 = tpu.matmul %24, %11, %cst {dimension_numbers = #tpu.dot_dimension_numbers<[1], [0], [0], [1], [0, 0, 1, 1], [], []>} : vector<128x128xf32>, vector<128x128xf32>, vector<128x128xf32> -> vector<128x128xf32>
      %27 = arith.addf %25, %26 : vector<128x128xf32>
      %c0_12 = arith.constant 0 : index
      %c0_13 = arith.constant 0 : index
      %28 = vector.load %arg9[%c0_12, %c0_13] : memref<128x128xf32, #tpu.memory_space<vmem>>, vector<128x128xf32>
      tpu.vector_store %arg9[%c0_12, %c0_13], %27 {strides = array<i32>} : memref<128x128xf32, #tpu.memory_space<vmem>>, vector<128x128xf32>,
      %c0_14 = arith.constant 0 : index
      %c0_15 = arith.constant 0 : index
      %29 = vector.load %arg10[%c0_14, %c0_15] : memref<128x128xf32, #tpu.memory_space<vmem>>, vector<128x128xf32>
      %cst_16 = arith.constant dense<0.000000e+00> : vector<128x128xf32>
      %30 = tpu.matmul %21, %11, %cst_16 {dimension_numbers = #tpu.dot_dimension_numbers<[1], [0], [0], [1], [0, 0, 1, 1], [], []>} : vector<128x128xf32>, vector<128x128xf32>, vector<128x128xf32> -> vector<128x128xf32>
      %31 = arith.addf %29, %30 : vector<128x128xf32>
      %c0_17 = arith.constant 0 : index
      %c0_18 = arith.constant 0 : index
      %32 = vector.load %arg10[%c0_17, %c0_18] : memref<128x128xf32, #tpu.memory_space<vmem>>, vector<128x128xf32>
      tpu.vector_store %arg10[%c0_17, %c0_18], %31 {strides = array<i32>} : memref<128x128xf32, #tpu.memory_space<vmem>>, vector<128x128xf32>,
    } else {
    }
    %c15_i32 = arith.constant 15 : i32
    %8 = arith.cmpi eq, %arg1, %c15_i32 : i32
    %9 = arith.extui %8 : i1 to i32
    %c0_i32_2 = arith.constant 0 : i32
    %10 = arith.cmpi ne, %9, %c0_i32_2 : i32
    scf.if %10 {
      %c0 = arith.constant 0 : index
      %c0_3 = arith.constant 0 : index
      %11 = vector.load %arg9[%c0, %c0_3] : memref<128x128xf32, #tpu.memory_space<vmem>>, vector<128x128xf32>
      %c0_4 = arith.constant 0 : index
      %c0_5 = arith.constant 0 : index
      %12 = vector.load %arg10[%c0_4, %c0_5] : memref<128x128xf32, #tpu.memory_space<vmem>>, vector<128x128xf32>
      %cst = arith.constant 9.99999993E-9 : f32
      %13 = vector.broadcast %cst : f32 to vector<128x128xf32>
      %14 = arith.addf %12, %13 : vector<128x128xf32>
      %15 = tpu.reciprocal %14 : vector<128x128xf32> -> vector<128x128xf32>
      %16 = arith.mulf %11, %15 : vector<128x128xf32>
      %c0_6 = arith.constant 0 : index
      %c0_7 = arith.constant 0 : index
      %17 = vector.load %arg8[%c0_6, %c0_7] : memref<128x128xf32, #tpu.memory_space<vmem>>, vector<128x128xf32>
      tpu.vector_store %arg8[%c0_6, %c0_7], %16 {strides = array<i32>} : memref<128x128xf32, #tpu.memory_space<vmem>>, vector<128x128xf32>,
    } else {
    }
    return
  }
  func.func @transform_0(%arg0: i32, %arg1: i32, %arg2: memref<2xi32, #tpu.memory_space<smem>>, %arg3: memref<2xi32, #tpu.memory_space<smem>>) -> (i32, i32) {
    %0 = arith.index_cast %arg0 : i32 to index
    %1 = memref.load %arg3[%0] : memref<2xi32, #tpu.memory_space<smem>>
    %c1_i32 = arith.constant 1 : i32
    %2 = arith.maxsi %1, %c1_i32 : i32
    %c1_i32_0 = arith.constant 1 : i32
    %3 = arith.subi %2, %c1_i32_0 : i32
    %4 = arith.index_cast %arg0 : i32 to index
    %5 = memref.load %arg2[%4] : memref<2xi32, #tpu.memory_space<smem>>
    %6 = arith.minsi %arg1, %3 : i32
    %7 = arith.addi %5, %6 : i32
    %c24_i32 = arith.constant 24 : i32
    %8 = arith.minsi %7, %c24_i32 : i32
    %c0_i32 = arith.constant 0 : i32
    %c0_i32_1 = arith.constant 0 : i32
    return %8, %c0_i32 : i32, i32
  }
  func.func @transform_1(%arg0: i32, %arg1: i32, %arg2: memref<2xi32, #tpu.memory_space<smem>>, %arg3: memref<2xi32, #tpu.memory_space<smem>>) -> (i32, i32) {
    %0 = arith.index_cast %arg0 : i32 to index
    %1 = memref.load %arg3[%0] : memref<2xi32, #tpu.memory_space<smem>>
    %c1_i32 = arith.constant 1 : i32
    %2 = arith.maxsi %1, %c1_i32 : i32
    %c1_i32_0 = arith.constant 1 : i32
    %3 = arith.subi %2, %c1_i32_0 : i32
    %4 = arith.index_cast %arg0 : i32 to index
    %5 = memref.load %arg2[%4] : memref<2xi32, #tpu.memory_space<smem>>
    %6 = arith.minsi %arg1, %3 : i32
    %7 = arith.addi %5, %6 : i32
    %c24_i32 = arith.constant 24 : i32
    %8 = arith.minsi %7, %c24_i32 : i32
    %c0_i32 = arith.constant 0 : i32
    %c0_i32_1 = arith.constant 0 : i32
    return %c0_i32, %8 : i32, i32
  }
  func.func @transform_2(%arg0: i32, %arg1: i32, %arg2: memref<2xi32, #tpu.memory_space<smem>>, %arg3: memref<2xi32, #tpu.memory_space<smem>>) -> (i32, i32) {
    %0 = arith.index_cast %arg0 : i32 to index
    %1 = memref.load %arg3[%0] : memref<2xi32, #tpu.memory_space<smem>>
    %c1_i32 = arith.constant 1 : i32
    %2 = arith.maxsi %1, %c1_i32 : i32
    %c1_i32_0 = arith.constant 1 : i32
    %3 = arith.subi %2, %c1_i32_0 : i32
    %4 = arith.index_cast %arg0 : i32 to index
    %5 = memref.load %arg2[%4] : memref<2xi32, #tpu.memory_space<smem>>
    %6 = arith.minsi %arg1, %3 : i32
    %7 = arith.addi %5, %6 : i32
    %c24_i32 = arith.constant 24 : i32
    %8 = arith.minsi %7, %c24_i32 : i32
    %c0_i32 = arith.constant 0 : i32
    %c0_i32_1 = arith.constant 0 : i32
    return %c0_i32, %8 : i32, i32
  }
  func.func @transform_3(%arg0: i32, %arg1: i32, %arg2: memref<2xi32, #tpu.memory_space<smem>>, %arg3: memref<2xi32, #tpu.memory_space<smem>>) -> (i32, i32) {
    %c0_i32 = arith.constant 0 : i32
    %c0_i32_0 = arith.constant 0 : i32
    %c0_i32_1 = arith.constant 0 : i32
    return %c0_i32, %c0_i32_0 : i32, i32
  }
  func.func @transform_4(%arg0: i32, %arg1: i32, %arg2: memref<2xi32, #tpu.memory_space<smem>>, %arg3: memref<2xi32, #tpu.memory_space<smem>>) -> (i32, i32) {
    %c0_i32 = arith.constant 0 : i32
    %c0_i32_0 = arith.constant 0 : i32
    return %arg0, %c0_i32 : i32, i32
  }
}

</mosaic_0001>

<llo_original>
// kernel: tpu_custom_call.1
$region0: #{tpu_custom_call.1}
  #allocation0 [shape = 'u32[]', space=smem, size = 0x4, offset = 0x4, fixed_abs, tag = 'smem constant byte address 0x4 - core index']
  #allocation1 [shape = 'u32[144,128]{1,0:T(1,128)}', space=vmem, size = 0x12000, scoped, tag = 'internal scratch']
  #allocation2 [shape = 'f32[128,128]{1,0:T(8,128)}', space=vmem, size = 0x10000, scoped, tag = 'scratch operand']
  #allocation3 [shape = 'f32[128,128]{1,0:T(8,128)}', space=vmem, size = 0x10000, scoped, tag = 'scratch operand']
  #allocation4 [shape = 's32[1]{0}', space=sflag, size = 0x4, scoped, tag = 'scoped memory for tpu_custom_call.1']
  #allocation5 [shape = 'u8[512]{0}', space=smem, size = 0x200, scoped, tag = 'prefetched SMEM operand 0']
  #allocation6 [shape = 'u8[512]{0}', space=smem, size = 0x200, scoped, tag = 'prefetched SMEM operand 1']
  %s0 = inlined_call_operand.hbm [shape: s32[2], index: 0, kind: input, shape index: {}]
  %s1 = inlined_call_operand.hbm [shape: s32[2], index: 1, kind: input, shape index: {}]
  %s2 = inlined_call_operand.hbm [shape: f32[3200,128], index: 2, kind: input, shape index: {}]
  %s3 = inlined_call_operand.hbm [shape: f32[1,3200], index: 3, kind: input, shape index: {}]
  %s4 = inlined_call_operand.hbm [shape: s32[1,3200], index: 4, kind: input, shape index: {}]
  %s5 = inlined_call_operand.vmem [shape: s32[128,1], index: 5, kind: input, shape index: {}]
  %s6 = inlined_call_operand.hbm [shape: f32[256,128], index: 6, kind: output, shape index: {}]
  %s7 = sld [smem:[#allocation0]]
  $region73: #{tpu_custom_call.1} parent=0
    _
  %s9 = ssub.s32 1, %s7
  %s10 = scalar_select 0, %s9, %s7
  %12 = dma.hbm_to_smem %s0, 16, [#allocation5], [#allocation4]
  %14 = dma.hbm_to_smem %s1, 16, [#allocation6], [#allocation4]
  %15 = dma.done [#allocation4], 32
  %16 = sfence
  $region1: #{tpu_custom_call.1} parent=0
    #allocation7 [shape = 'u8[131072]{0}', space=vmem, size = 0x20000, scoped, tag = 'input window, operand 2']
    #allocation8 [shape = 's32[2]{0}', space=sflag, size = 0x8, scoped, tag = 'scoped memory for tpu_custom_call.1']
    #allocation9 [shape = 's32[2]{0}', space=sflag, size = 0x8, scoped, tag = 'scoped memory for tpu_custom_call.1']
    #allocation10 [shape = 'u8[1024]{0}', space=vmem, size = 0x400, scoped, tag = 'input window, operand 3']
    #allocation11 [shape = 's32[2]{0}', space=sflag, size = 0x8, scoped, tag = 'scoped memory for tpu_custom_call.1']
    #allocation12 [shape = 'u8[1024]{0}', space=vmem, size = 0x400, scoped, tag = 'input window, operand 4']
    #allocation13 [shape = 'u8[131072]{0}', space=vmem, size = 0x20000, scoped, tag = 'output window, operand 0']
    %17 = vsyncpa [#allocation8], 0
    %s18 = scalar_lea.sflag [#allocation8], 1
    %19 = vsyncpa %s18, 0
    %20 = vsyncpa [#allocation11], 0
    %s21 = scalar_lea.sflag [#allocation11], 1
    %22 = vsyncpa %s21, 0
    %23 = vsyncpa [#allocation9], 0
    %s24 = scalar_lea.sflag [#allocation9], 1
    %25 = vsyncpa %s24, 0
    loop: start=0, step=1, limit=34
    $region2: #{tpu_custom_call.1} parent=1 // loop_pre_header
      _
    $region3: #{tpu_custom_call.1} parent=1 // loop_header
      %s27 = sphi 0, %s31
      %p28 = scmp.ge.s32.totalorder %s27, 34
      %s34 = sphi 0, %s46
      %s35 = sphi 0, %s42
      %s36 = sphi 0, %s34
      %s37 = sphi 0, %s35
      %s38 = sphi 0, %s36
      %s39 = sphi 0, %s37
      %s69 = sphi 0, %s71
      %s72 = sphi 0, %s69
      %s73 = sphi 0, %s72
      %s89 = sphi 0, %s73
      %s115 = sphi 0, %s117
      %s118 = sphi 0, %s115
      %s119 = sphi 0, %s118
      %s135 = sphi 0, %s119
      %s161 = sphi 0, %s163
      %s164 = sphi 0, %s161
      %s165 = sphi 0, %s164
      %s181 = sphi 0, %s165
      %s185 = sphi 0, %s185
      %s187 = sphi 0, %s185
      %s188 = sphi 0, %s187
      %s202 = sphi 0, %s188
      %s208 = sphi 0, %s210
      %s211 = sphi 0, %s208
      %s212 = sphi 0, %s211
      %s228 = sphi 0, %s212
    $region4: #{tpu_custom_call.1} parent=1 // loop_header_branch
      %30 = sbr.rel (%p28) target = $region8
    $region5: #{tpu_custom_call.1} parent=1 // loop_body
      %s32 = ssub.s32 %s27, 1
      %s33 = ssub.s32 %s27, 2
      %s40 = sadd.s32 1, %s35
      %p41 = scmp.ge.s32.totalorder %s40, 16
      %s42 = scalar_select %p41, 0, %s40
      %s43 = sadd.s32 1, %s34
      %s44 = scalar_select %p41, %s43, %s34
      %p45 = scmp.ge.s32.totalorder %s44, 2
      %s46 = scalar_select %p45, 0, %s44
      %s47 = sld [smem:[#allocation6 + %s34]]
      %p48 = scmp.gt.s32.totalorder %s47, 1
      %s49 = scalar_select %p48, %s47, 1
      %s50 = ssub.s32 %s49, 1
      %s51 = sld [smem:[#allocation5 + %s34]]
      %p52 = scmp.lt.s32.totalorder %s35, %s50
      %s53 = scalar_select %p52, %s35, %s50
      %s54 = sadd.s32 %s51, %s53
      %p55 = scmp.lt.s32.totalorder %s54, 24
      %s56 = scalar_select %p55, %s54, 24
      %s57 = sld [smem:[#allocation6 + %s46]]
      %p58 = scmp.gt.s32.totalorder %s57, 1
      %s59 = scalar_select %p58, %s57, 1
      %s60 = ssub.s32 %s59, 1
      %s61 = sld [smem:[#allocation5 + %s46]]
      %p62 = scmp.lt.s32.totalorder %s42, %s60
      %s63 = scalar_select %p62, %s42, %s60
      %s64 = sadd.s32 %s61, %s63
      %p65 = scmp.lt.s32.totalorder %s64, 24
      %s66 = scalar_select %p65, %s64, 24
      %s67 = ssub.s32 %s56, %s66
      %p68 = scmp.eq.s32.totalorder %s67, 0
      %s70 = sadd.s32 %s69, 1
      %s71 = scalar_select %p68, %s69, %s70
      %p74 = pneg %p68
      %p75 = scmp.eq.s32.totalorder %s27, 31
      %p76 = por %p74, %p75
      %p77 = scmp.ne.s32.totalorder %s69, %s72
      %p78 = scmp.eq.s32.totalorder %s27, 0
      %p79 = por %p77, %p78
      %p80 = scmp.ne.s32.totalorder %s69, %s72
      %p81 = scmp.eq.s32.totalorder %s32, 31
      %p82 = por %p80, %p81
      %p83 = scmp.ne.s32.totalorder %s72, %s73
      %p84 = scmp.eq.s32.totalorder %s32, 0
      %p85 = por %p83, %p84
      %p86 = scmp.ne.s32.totalorder %s72, %s73
      %p87 = scmp.eq.s32.totalorder %s33, 31
      %p88 = por %p86, %p87
      %p90 = scmp.ne.s32.totalorder %s73, %s89
      %p91 = scmp.eq.s32.totalorder %s33, 0
      %p92 = por %p90, %p91
      %s93 = sld [smem:[#allocation6 + %s34]]
      %p94 = scmp.gt.s32.totalorder %s93, 1
      %s95 = scalar_select %p94, %s93, 1
      %s96 = ssub.s32 %s95, 1
      %s97 = sld [smem:[#allocation5 + %s34]]
      %p98 = scmp.lt.s32.totalorder %s35, %s96
      %s99 = scalar_select %p98, %s35, %s96
      %s100 = sadd.s32 %s97, %s99
      %p101 = scmp.lt.s32.totalorder %s100, 24
      %s102 = scalar_select %p101, %s100, 24
      %s103 = sld [smem:[#allocation6 + %s46]]
      %p104 = scmp.gt.s32.totalorder %s103, 1
      %s105 = scalar_select %p104, %s103, 1
      %s106 = ssub.s32 %s105, 1
      %s107 = sld [smem:[#allocation5 + %s46]]
      %p108 = scmp.lt.s32.totalorder %s42, %s106
      %s109 = scalar_select %p108, %s42, %s106
      %s110 = sadd.s32 %s107, %s109
      %p111 = scmp.lt.s32.totalorder %s110, 24
      %s112 = scalar_select %p111, %s110, 24
      %s113 = ssub.s32 %s102, %s112
      %p114 = scmp.eq.s32.totalorder %s113, 0
      %s116 = sadd.s32 %s115, 1
      %s117 = scalar_select %p114, %s115, %s116
      %p120 = pneg %p114
      %p121 = scmp.eq.s32.totalorder %s27, 31
      %p122 = por %p120, %p121
      %p123 = scmp.ne.s32.totalorder %s115, %s118
      %p124 = scmp.eq.s32.totalorder %s27, 0
      %p125 = por %p123, %p124
      %p126 = scmp.ne.s32.totalorder %s115, %s118
      %p127 = scmp.eq.s32.totalorder %s32, 31
      %p128 = por %p126, %p127
      %p129 = scmp.ne.s32.totalorder %s118, %s119
      %p130 = scmp.eq.s32.totalorder %s32, 0
      %p131 = por %p129, %p130
      %p132 = scmp.ne.s32.totalorder %s118, %s119
      %p133 = scmp.eq.s32.totalorder %s33, 31
      %p134 = por %p132, %p133
      %p136 = scmp.ne.s32.totalorder %s119, %s135
      %p137 = scmp.eq.s32.totalorder %s33, 0
      %p138 = por %p136, %p137
      %s139 = sld [smem:[#allocation6 + %s34]]
      %p140 = scmp.gt.s32.totalorder %s139, 1
      %s141 = scalar_select %p140, %s139, 1
      %s142 = ssub.s32 %s141, 1
      %s143 = sld [smem:[#allocation5 + %s34]]
      %p144 = scmp.lt.s32.totalorder %s35, %s142
      %s145 = scalar_select %p144, %s35, %s142
      %s146 = sadd.s32 %s143, %s145
      %p147 = scmp.lt.s32.totalorder %s146, 24
      %s148 = scalar_select %p147, %s146, 24
      %s149 = sld [smem:[#allocation6 + %s46]]
      %p150 = scmp.gt.s32.totalorder %s149, 1
      %s151 = scalar_select %p150, %s149, 1
      %s152 = ssub.s32 %s151, 1
      %s153 = sld [smem:[#allocation5 + %s46]]
      %p154 = scmp.lt.s32.totalorder %s42, %s152
      %s155 = scalar_select %p154, %s42, %s152
      %s156 = sadd.s32 %s153, %s155
      %p157 = scmp.lt.s32.totalorder %s156, 24
      %s158 = scalar_select %p157, %s156, 24
      %s159 = ssub.s32 %s148, %s158
      %p160 = scmp.eq.s32.totalorder %s159, 0
      %s162 = sadd.s32 %s161, 1
      %s163 = scalar_select %p160, %s161, %s162
      %p166 = pneg %p160
      %p167 = scmp.eq.s32.totalorder %s27, 31
      %p168 = por %p166, %p167
      %p169 = scmp.ne.s32.totalorder %s161, %s164
      %p170 = scmp.eq.s32.totalorder %s27, 0
      %p171 = por %p169, %p170
      %p172 = scmp.ne.s32.totalorder %s161, %s164
      %p173 = scmp.eq.s32.totalorder %s32, 31
      %p174 = por %p172, %p173
      %p175 = scmp.ne.s32.totalorder %s164, %s165
      %p176 = scmp.eq.s32.totalorder %s32, 0
      %p177 = por %p175, %p176
      %p178 = scmp.ne.s32.totalorder %s164, %s165
      %p179 = scmp.eq.s32.totalorder %s33, 31
      %p180 = por %p178, %p179
      %p182 = scmp.ne.s32.totalorder %s165, %s181
      %p183 = scmp.eq.s32.totalorder %s33, 0
      %p184 = por %p182, %p183
      %s186 = sadd.s32 %s185, 1
      %p189 = scmp.eq.s32.totalorder %s27, 31
      %p190 = scmp.ne.s32.totalorder %s185, %s187
      %p191 = scmp.eq.s32.totalorder %s27, 0
      %p192 = por %p190, %p191
      %p193 = scmp.ne.s32.totalorder %s185, %s187
      %p194 = scmp.eq.s32.totalorder %s32, 31
      %p195 = por %p193, %p194
      %p196 = scmp.ne.s32.totalorder %s187, %s188
      %p197 = scmp.eq.s32.totalorder %s32, 0
      %p198 = por %p196, %p197
      %p199 = scmp.ne.s32.totalorder %s187, %s188
      %p200 = scmp.eq.s32.totalorder %s33, 31
      %p201 = por %p199, %p200
      %p203 = scmp.ne.s32.totalorder %s188, %s202
      %p204 = scmp.eq.s32.totalorder %s33, 0
      %p205 = por %p203, %p204
      %s206 = ssub.s32 %s34, %s46
      %p207 = scmp.eq.s32.totalorder %s206, 0
      %s209 = sadd.s32 %s208, 1
      %s210 = scalar_select %p207, %s208, %s209
      %p213 = pneg %p207
      %p214 = scmp.eq.s32.totalorder %s27, 31
      %p215 = por %p213, %p214
      %p216 = scmp.ne.s32.totalorder %s208, %s211
      %p217 = scmp.eq.s32.totalorder %s27, 0
      %p218 = por %p216, %p217
      %p219 = scmp.ne.s32.totalorder %s208, %s211
      %p220 = scmp.eq.s32.totalorder %s32, 31
      %p221 = por %p219, %p220
      %p222 = scmp.ne.s32.totalorder %s211, %s212
      %p223 = scmp.eq.s32.totalorder %s32, 0
      %p224 = por %p222, %p223
      %p225 = scmp.ne.s32.totalorder %s211, %s212
      %p226 = scmp.eq.s32.totalorder %s33, 31
      %p227 = por %p225, %p226
      %p229 = scmp.ne.s32.totalorder %s212, %s228
      %p230 = scmp.eq.s32.totalorder %s33, 0
      %p231 = por %p229, %p230
      %p232 = scmp.le.s32.totalorder 1, %s27
      %p233 = scmp.lt.s32.totalorder %s27, 33
      %p234 = pnand %p232, %p233
      %p235 = pneg %p234
      // Predicated region
      $region9: #{tpu_custom_call.1} parent=5 // pred_check
        _
      $region10: #{tpu_custom_call.1} parent=5 // pred_check_branch
        %237 = sbr.rel (%p234) target = $region12
      $region11: #{tpu_custom_call.1} parent=5 // pred_region
        %s238 = ssub.s32 %s27, 1
        // Predicated region
        $region13: #{tpu_custom_call.1} parent=11 // pred_check
          %p239 = pneg %p198
        $region14: #{tpu_custom_call.1} parent=11 // pred_check_branch
          %241 = sbr.rel (%p239) target = $region16
        $region15: #{tpu_custom_call.1} parent=11 // pred_region
          _
        $region16: #{tpu_custom_call.1} parent=11 // pred_fallthru
          _
      $region12: #{tpu_custom_call.1} parent=5 // pred_fallthru
        _
      %p242 = scmp.lt.s32.totalorder %s27, 32
      // Predicated region
      $region17: #{tpu_custom_call.1} parent=5 // pred_check
        %p243 = pneg %p242
      $region18: #{tpu_custom_call.1} parent=5 // pred_check_branch
        %245 = sbr.rel (%p243) target = $region20
      $region19: #{tpu_custom_call.1} parent=5 // pred_region
        // Predicated region
        $region21: #{tpu_custom_call.1} parent=19 // pred_check
          %p246 = pneg %p79
        $region22: #{tpu_custom_call.1} parent=19 // pred_check_branch
          %248 = sbr.rel (%p246) target = $region24
        $region23: #{tpu_custom_call.1} parent=19 // pred_region
          %s249 = sand.u32 %s69, 1
          %s250 = scalar_lea.sflag [#allocation8], %s249
          %s251 = sand.u32 %s69, 1
          %s252 = smul.addr %s251, 128
          %s253 = scalar_lea.vmem [#allocation7], %s252
          %s254 = sld [smem:[#allocation6 + %s34]]
          %p255 = scmp.gt.s32.totalorder %s254, 1
          %s256 = scalar_select %p255, %s254, 1
          %s257 = ssub.s32 %s256, 1
          %s258 = sld [smem:[#allocation5 + %s34]]
          %p259 = scmp.lt.s32.totalorder %s35, %s257
          %s260 = scalar_select %p259, %s35, %s257
          %s261 = sadd.s32 %s258, %s260
          %p262 = scmp.lt.s32.totalorder %s261, 24
          %s263 = scalar_select %p262, %s261, 24
          %s264 = smul.u32 16, %s263
          %s266 = ssub.s32 2048, 2048
          %267 = vsyncadd %s250, %s266
          %s268 = smul.addr %s264, 128
          %s269 = scalar_lea.hbm %s2, %s268
          %s270 = sshll.u32 %s253, 4
          %s271 = int_to_ptr.vmem [resolvable:$true] %s270
          %276 = dma.hbm_to_vmem [thread:$0]  %s269, 2048, %s271, %s250, 128, 128, 8
        $region24: #{tpu_custom_call.1} parent=19 // pred_fallthru
          _
        // Predicated region
        $region25: #{tpu_custom_call.1} parent=19 // pred_check
          %p277 = pneg %p125
        $region26: #{tpu_custom_call.1} parent=19 // pred_check_branch
          %279 = sbr.rel (%p277) target = $region28
        $region27: #{tpu_custom_call.1} parent=19 // pred_region
          %s280 = sand.u32 %s27, 1
          %s281 = scalar_lea.sflag [#allocation11], %s280
          %s282 = sand.u32 %s115, 1
          %s283 = scalar_lea.vmem [#allocation10], %s282
          %s284 = sld [smem:[#allocation6 + %s34]]
          %p285 = scmp.gt.s32.totalorder %s284, 1
          %s286 = scalar_select %p285, %s284, 1
          %s287 = ssub.s32 %s286, 1
          %s288 = sld [smem:[#allocation5 + %s34]]
          %p289 = scmp.lt.s32.totalorder %s35, %s287
          %s290 = scalar_select %p289, %s35, %s287
          %s291 = sadd.s32 %s288, %s290
          %p292 = scmp.lt.s32.totalorder %s291, 24
          %s293 = scalar_select %p292, %s291, 24
          %s295 = ssub.s32 16, 16
          %296 = vsyncadd %s281, %s295
          %s297 = smul.addr %s293, 16
          %s298 = scalar_lea.hbm %s3, %s297
          %s300 = sshll.u32 %s283, 4
          %s301 = int_to_ptr.vmem [resolvable:$true] %s300
          %303 = dma.hbm_to_vmem [thread:$0]  %s298, 16, %s301, %s281
        $region28: #{tpu_custom_call.1} parent=19 // pred_fallthru
          _
        // Predicated region
        $region29: #{tpu_custom_call.1} parent=19 // pred_check
          %p304 = pneg %p171
        $region30: #{tpu_custom_call.1} parent=19 // pred_check_branch
          %306 = sbr.rel (%p304) target = $region32
        $region31: #{tpu_custom_call.1} parent=19 // pred_region
          %s307 = sand.u32 %s27, 1
          %s308 = scalar_lea.sflag [#allocation11], %s307
          %s309 = sand.u32 %s161, 1
          %s310 = scalar_lea.vmem [#allocation12], %s309
          %s311 = sld [smem:[#allocation6 + %s34]]
          %p312 = scmp.gt.s32.totalorder %s311, 1
          %s313 = scalar_select %p312, %s311, 1
          %s314 = ssub.s32 %s313, 1
          %s315 = sld [smem:[#allocation5 + %s34]]
          %p316 = scmp.lt.s32.totalorder %s35, %s314
          %s317 = scalar_select %p316, %s35, %s314
          %s318 = sadd.s32 %s315, %s317
          %p319 = scmp.lt.s32.totalorder %s318, 24
          %s320 = scalar_select %p319, %s318, 24
          %s322 = ssub.s32 16, 16
          %323 = vsyncadd %s308, %s322
          %s324 = smul.addr %s320, 16
          %s325 = scalar_lea.hbm %s4, %s324
          %s327 = sshll.u32 %s310, 4
          %s328 = int_to_ptr.vmem [resolvable:$true] %s327
          %330 = dma.hbm_to_vmem [thread:$0]  %s325, 16, %s328, %s308
        $region32: #{tpu_custom_call.1} parent=19 // pred_fallthru
          _
      $region20: #{tpu_custom_call.1} parent=5 // pred_fallthru
        _
      %p331 = scmp.le.s32.totalorder 1, %s27
      %p332 = scmp.lt.s32.totalorder %s27, 33
      %p333 = pnand %p331, %p332
      %p334 = pneg %p333
      // Predicated region
      $region33: #{tpu_custom_call.1} parent=5 // pred_check
        _
      $region34: #{tpu_custom_call.1} parent=5 // pred_check_branch
        %336 = sbr.rel (%p333) target = $region36
      $region35: #{tpu_custom_call.1} parent=5 // pred_region
        %s337 = ssub.s32 %s27, 1
        %s338 = sand.u32 %s72, 1
        %s339 = scalar_lea.sflag [#allocation8], %s338
        %s340 = sand.u32 %s72, 1
        %s341 = smul.addr %s340, 128
        %s342 = scalar_lea.vmem [#allocation7], %s341
        // Predicated region
        $region37: #{tpu_custom_call.1} parent=35 // pred_check
          %p343 = pneg %p85
        $region38: #{tpu_custom_call.1} parent=35 // pred_check_branch
          %345 = sbr.rel (%p343) target = $region40
        $region39: #{tpu_custom_call.1} parent=35 // pred_region
          %346 = dma.done %s339, 2048
        $region40: #{tpu_custom_call.1} parent=35 // pred_fallthru
          _
        %s347 = sand.u32 %s32, 1
        %s348 = scalar_lea.sflag [#allocation11], %s347
        %s349 = sand.u32 %s118, 1
        %s350 = scalar_lea.vmem [#allocation10], %s349
        // Predicated region
        $region41: #{tpu_custom_call.1} parent=35 // pred_check
          %p351 = pneg %p131
        $region42: #{tpu_custom_call.1} parent=35 // pred_check_branch
          %353 = sbr.rel (%p351) target = $region44
        $region43: #{tpu_custom_call.1} parent=35 // pred_region
          %354 = dma.done %s348, 16
        $region44: #{tpu_custom_call.1} parent=35 // pred_fallthru
          _
        %s355 = sand.u32 %s32, 1
        %s356 = scalar_lea.sflag [#allocation11], %s355
        %s357 = sand.u32 %s164, 1
        %s358 = scalar_lea.vmem [#allocation12], %s357
        // Predicated region
        $region45: #{tpu_custom_call.1} parent=35 // pred_check
          %p359 = pneg %p177
        $region46: #{tpu_custom_call.1} parent=35 // pred_check_branch
          %361 = sbr.rel (%p359) target = $region48
        $region47: #{tpu_custom_call.1} parent=35 // pred_region
          %362 = dma.done %s356, 16
        $region48: #{tpu_custom_call.1} parent=35 // pred_fallthru
          _
        %s363 = sand.u32 %s72, 1
        %s364 = scalar_lea.sflag [#allocation8], %s363
        %s365 = sand.u32 %s72, 1
        %s366 = smul.addr %s365, 128
        %s367 = scalar_lea.vmem [#allocation7], %s366
        %p368 = pneg %p85
        %p369 = pneg %p82
        %s370 = sand.u32 %s32, 1
        %s371 = scalar_lea.sflag [#allocation11], %s370
        %s372 = sand.u32 %s118, 1
        %s373 = scalar_lea.vmem [#allocation10], %s372
        %p374 = pneg %p131
        %p375 = pneg %p128
        %s376 = sand.u32 %s32, 1
        %s377 = scalar_lea.sflag [#allocation11], %s376
        %s378 = sand.u32 %s164, 1
        %s379 = scalar_lea.vmem [#allocation12], %s378
        %p380 = pneg %p177
        %p381 = pneg %p174
        %p382 = pneg %p198
        %p383 = pneg %p195
        %p384 = pneg %p224
        %p385 = pneg %p221
        %s386 = sand.u32 %s211, 1
        %s387 = scalar_lea.sflag [#allocation9], %s386
        %s388 = sand.u32 %s211, 1
        %s389 = smul.addr %s388, 128
        %s390 = scalar_lea.vmem [#allocation13], %s389
        %s391 = sld [smem:[#allocation6 + %s36]]
        %p392 = scmp.gt.s32.totalorder %s391, 1
        %s393 = scalar_select %p392, %s391, 1
        %s394 = ssub.s32 %s393, 1
        %s395 = sld [smem:[#allocation5 + %s36]]
        %p396 = scmp.lt.s32.totalorder %s37, %s394
        %s397 = scalar_select %p396, %s37, %s394
        %s398 = sadd.s32 %s395, %s397
        %p399 = scmp.lt.s32.totalorder %s398, 24
        %s400 = scalar_select %p399, %s398, 24
        %s401 = smul.u32 16, %s400
        %s402 = sld [smem:[#allocation6 + %s36]]
        %p403 = scmp.gt.s32.totalorder %s402, 1
        %s404 = scalar_select %p403, %s402, 1
        %s405 = ssub.s32 %s404, 1
        %s406 = sld [smem:[#allocation5 + %s36]]
        %p407 = scmp.lt.s32.totalorder %s37, %s405
        %s408 = scalar_select %p407, %s37, %s405
        %s409 = sadd.s32 %s406, %s408
        %p410 = scmp.lt.s32.totalorder %s409, 24
        %s411 = scalar_select %p410, %s409, 24
        %s412 = sld [smem:[#allocation6 + %s36]]
        %p413 = scmp.gt.s32.totalorder %s412, 1
        %s414 = scalar_select %p413, %s412, 1
        %s415 = ssub.s32 %s414, 1
        %s416 = sld [smem:[#allocation5 + %s36]]
        %p417 = scmp.lt.s32.totalorder %s37, %s415
        %s418 = scalar_select %p417, %s37, %s415
        %s419 = sadd.s32 %s416, %s418
        %p420 = scmp.lt.s32.totalorder %s419, 24
        %s421 = scalar_select %p420, %s419, 24
        %s422 = smul.u32 16, %s36
        %p423 = scmp.eq.s32.totalorder %s37, 0
        // Predicated region
        $region49: #{tpu_custom_call.1} parent=35 // pred_check
          %p424 = pneg %p423
        $region50: #{tpu_custom_call.1} parent=35 // pred_check_branch
          %426 = sbr.rel (%p424) target = $region52
        $region51: #{tpu_custom_call.1} parent=35 // pred_region
          %427 = vst [vmem:[#allocation2] sm:$0xff] 0.0
          %428 = vst [vmem:[#allocation2 + $0x8] sm:$0xff] 0.0
          %429 = vst [vmem:[#allocation2 + $0x10] sm:$0xff] 0.0
          %430 = vst [vmem:[#allocation2 + $0x18] sm:$0xff] 0.0
          %431 = vst [vmem:[#allocation2 + $0x20] sm:$0xff] 0.0
          %432 = vst [vmem:[#allocation2 + $0x28] sm:$0xff] 0.0
          %433 = vst [vmem:[#allocation2 + $0x30] sm:$0xff] 0.0
          %434 = vst [vmem:[#allocation2 + $0x38] sm:$0xff] 0.0
          %435 = vst [vmem:[#allocation2 + $0x40] sm:$0xff] 0.0
          %436 = vst [vmem:[#allocation2 + $0x48] sm:$0xff] 0.0
          %437 = vst [vmem:[#allocation2 + $0x50] sm:$0xff] 0.0
          %438 = vst [vmem:[#allocation2 + $0x58] sm:$0xff] 0.0
          %439 = vst [vmem:[#allocation2 + $0x60] sm:$0xff] 0.0
          %440 = vst [vmem:[#allocation2 + $0x68] sm:$0xff] 0.0
          %441 = vst [vmem:[#allocation2 + $0x70] sm:$0xff] 0.0
          %442 = vst [vmem:[#allocation2 + $0x78] sm:$0xff] 0.0
          %443 = vst [vmem:[#allocation3] sm:$0xff] 0.0
          %444 = vst [vmem:[#allocation3 + $0x8] sm:$0xff] 0.0
          %445 = vst [vmem:[#allocation3 + $0x10] sm:$0xff] 0.0
          %446 = vst [vmem:[#allocation3 + $0x18] sm:$0xff] 0.0
          %447 = vst [vmem:[#allocation3 + $0x20] sm:$0xff] 0.0
          %448 = vst [vmem:[#allocation3 + $0x28] sm:$0xff] 0.0
          %449 = vst [vmem:[#allocation3 + $0x30] sm:$0xff] 0.0
          %450 = vst [vmem:[#allocation3 + $0x38] sm:$0xff] 0.0
          %451 = vst [vmem:[#allocation3 + $0x40] sm:$0xff] 0.0
          %452 = vst [vmem:[#allocation3 + $0x48] sm:$0xff] 0.0
          %453 = vst [vmem:[#allocation3 + $0x50] sm:$0xff] 0.0
          %454 = vst [vmem:[#allocation3 + $0x58] sm:$0xff] 0.0
          %455 = vst [vmem:[#allocation3 + $0x60] sm:$0xff] 0.0
          %456 = vst [vmem:[#allocation3 + $0x68] sm:$0xff] 0.0
          %457 = vst [vmem:[#allocation3 + $0x70] sm:$0xff] 0.0
          %458 = vst [vmem:[#allocation3 + $0x78] sm:$0xff] 0.0
        $region52: #{tpu_custom_call.1} parent=35 // pred_fallthru
          _
        %s459 = sld [smem:[#allocation6 + %s36]]
        %p460 = scmp.lt.s32.totalorder %s37, %s459
        // Predicated region
        $region53: #{tpu_custom_call.1} parent=35 // pred_check
          %p461 = pneg %p460
        $region54: #{tpu_custom_call.1} parent=35 // pred_check_branch
          %463 = sbr.rel (%p461) target = $region56
        $region55: #{tpu_custom_call.1} parent=35 // pred_region
          %v464 = vld [vmem:[%s342] sm:$0xff]
          %v465 = vld [vmem:[%s342 + $0x8] sm:$0xff]
          %v466 = vld [vmem:[%s342 + $0x10] sm:$0xff]
          %v467 = vld [vmem:[%s342 + $0x18] sm:$0xff]
          %v468 = vld [vmem:[%s342 + $0x20] sm:$0xff]
          %v469 = vld [vmem:[%s342 + $0x28] sm:$0xff]
          %v470 = vld [vmem:[%s342 + $0x30] sm:$0xff]
          %v471 = vld [vmem:[%s342 + $0x38] sm:$0xff]
          %v472 = vld [vmem:[%s342 + $0x40] sm:$0xff]
          %v473 = vld [vmem:[%s342 + $0x48] sm:$0xff]
          %v474 = vld [vmem:[%s342 + $0x50] sm:$0xff]
          %v475 = vld [vmem:[%s342 + $0x58] sm:$0xff]
          %v476 = vld [vmem:[%s342 + $0x60] sm:$0xff]
          %v477 = vld [vmem:[%s342 + $0x68] sm:$0xff]
          %v478 = vld [vmem:[%s342 + $0x70] sm:$0xff]
          %v479 = vld [vmem:[%s342 + $0x78] sm:$0xff]
          %v480 = vld [vmem:[%s358] sm:$0x1]
          %s481 = smul.u32 %s36, 128
          %v482 = vstv %s481
          %v483 = vsub.s32 %v480, %v482
          %v484 = vld [vmem:[%s5] sm:$0xff]
          %v485 = vld [vmem:[%s5 + $0x8] sm:$0xff]
          %v486 = vld [vmem:[%s5 + $0x10] sm:$0xff]
          %v487 = vld [vmem:[%s5 + $0x18] sm:$0xff]
          %v488 = vld [vmem:[%s5 + $0x20] sm:$0xff]
          %v489 = vld [vmem:[%s5 + $0x28] sm:$0xff]
          %v490 = vld [vmem:[%s5 + $0x30] sm:$0xff]
          %v491 = vld [vmem:[%s5 + $0x38] sm:$0xff]
          %v492 = vld [vmem:[%s5 + $0x40] sm:$0xff]
          %v493 = vld [vmem:[%s5 + $0x48] sm:$0xff]
          %v494 = vld [vmem:[%s5 + $0x50] sm:$0xff]
          %v495 = vld [vmem:[%s5 + $0x58] sm:$0xff]
          %v496 = vld [vmem:[%s5 + $0x60] sm:$0xff]
          %v497 = vld [vmem:[%s5 + $0x68] sm:$0xff]
          %v498 = vld [vmem:[%s5 + $0x70] sm:$0xff]
          %v499 = vld [vmem:[%s5 + $0x78] sm:$0xff]
          %500 = vset.pattern.permute.xlu0 0
          %501 = vperm.xlu0 %500, %v484
          %v502 = vpop.permute.xlu0 %501
          %503 = vset.pattern.permute.xlu0 0
          %504 = vperm.xlu0 %503, %v485
          %v505 = vpop.permute.xlu0 %504
          %506 = vset.pattern.permute.xlu0 0
          %507 = vperm.xlu0 %506, %v486
          %v508 = vpop.permute.xlu0 %507
          %509 = vset.pattern.permute.xlu0 0
          %510 = vperm.xlu0 %509, %v487
          %v511 = vpop.permute.xlu0 %510
          %512 = vset.pattern.permute.xlu0 0
          %513 = vperm.xlu0 %512, %v488
          %v514 = vpop.permute.xlu0 %513
          %515 = vset.pattern.permute.xlu0 0
          %516 = vperm.xlu0 %515, %v489
          %v517 = vpop.permute.xlu0 %516
          %518 = vset.pattern.permute.xlu0 0
          %519 = vperm.xlu0 %518, %v490
          %v520 = vpop.permute.xlu0 %519
          %521 = vset.pattern.permute.xlu0 0
          %522 = vperm.xlu0 %521, %v491
          %v523 = vpop.permute.xlu0 %522
          %524 = vset.pattern.permute.xlu0 0
          %525 = vperm.xlu0 %524, %v492
          %v526 = vpop.permute.xlu0 %525
          %527 = vset.pattern.permute.xlu0 0
          %528 = vperm.xlu0 %527, %v493
          %v529 = vpop.permute.xlu0 %528
          %530 = vset.pattern.permute.xlu0 0
          %531 = vperm.xlu0 %530, %v494
          %v532 = vpop.permute.xlu0 %531
          %533 = vset.pattern.permute.xlu0 0
          %534 = vperm.xlu0 %533, %v495
          %v535 = vpop.permute.xlu0 %534
          %536 = vset.pattern.permute.xlu0 0
          %537 = vperm.xlu0 %536, %v496
          %v538 = vpop.permute.xlu0 %537
          %539 = vset.pattern.permute.xlu0 0
          %540 = vperm.xlu0 %539, %v497
          %v541 = vpop.permute.xlu0 %540
          %542 = vset.pattern.permute.xlu0 0
          %543 = vperm.xlu0 %542, %v498
          %v544 = vpop.permute.xlu0 %543
          %545 = vset.pattern.permute.xlu0 0
          %546 = vperm.xlu0 %545, %v499
          %v547 = vpop.permute.xlu0 %546
          %v548 = vlaneseq
          %v549 = vshrl.u32 %v548, 7
          %v550 = vsub.s32 0, %v549
          %v551 = vrot.slane %v483, %v550
          %vm552 = vcmp.eq.s32.totalorder %v502, %v551
          %vm553 = vcmp.eq.s32.totalorder %v505, %v551
          %vm554 = vcmp.eq.s32.totalorder %v508, %v551
          %vm555 = vcmp.eq.s32.totalorder %v511, %v551
          %vm556 = vcmp.eq.s32.totalorder %v514, %v551
          %vm557 = vcmp.eq.s32.totalorder %v517, %v551
          %vm558 = vcmp.eq.s32.totalorder %v520, %v551
          %vm559 = vcmp.eq.s32.totalorder %v523, %v551
          %vm560 = vcmp.eq.s32.totalorder %v526, %v551
          %vm561 = vcmp.eq.s32.totalorder %v529, %v551
          %vm562 = vcmp.eq.s32.totalorder %v532, %v551
          %vm563 = vcmp.eq.s32.totalorder %v535, %v551
          %vm564 = vcmp.eq.s32.totalorder %v538, %v551
          %vm565 = vcmp.eq.s32.totalorder %v541, %v551
          %vm566 = vcmp.eq.s32.totalorder %v544, %v551
          %vm567 = vcmp.eq.s32.totalorder %v547, %v551
          %v568 = vsel %vm552, 1, 0
          %v569 = vsel %vm553, 1, 0
          %v570 = vsel %vm554, 1, 0
          %v571 = vsel %vm555, 1, 0
          %v572 = vsel %vm556, 1, 0
          %v573 = vsel %vm557, 1, 0
          %v574 = vsel %vm558, 1, 0
          %v575 = vsel %vm559, 1, 0
          %v576 = vsel %vm560, 1, 0
          %v577 = vsel %vm561, 1, 0
          %v578 = vsel %vm562, 1, 0
          %v579 = vsel %vm563, 1, 0
          %v580 = vsel %vm564, 1, 0
          %v581 = vsel %vm565, 1, 0
          %v582 = vsel %vm566, 1, 0
          %v583 = vsel %vm567, 1, 0
          %v584 = vcvt.s32.f32 %v568
          %v585 = vcvt.s32.f32 %v569
          %v586 = vcvt.s32.f32 %v570
          %v587 = vcvt.s32.f32 %v571
          %v588 = vcvt.s32.f32 %v572
          %v589 = vcvt.s32.f32 %v573
          %v590 = vcvt.s32.f32 %v574
          %v591 = vcvt.s32.f32 %v575
          %v592 = vcvt.s32.f32 %v576
          %v593 = vcvt.s32.f32 %v577
          %v594 = vcvt.s32.f32 %v578
          %v595 = vcvt.s32.f32 %v579
          %v596 = vcvt.s32.f32 %v580
          %v597 = vcvt.s32.f32 %v581
          %v598 = vcvt.s32.f32 %v582
          %v599 = vcvt.s32.f32 %v583
          %v600 = vld [vmem:[%s350] sm:$0x1]
          %v602 = vlaneseq
          %v603 = vshrl.u32 %v602, 7
          %v604 = vsub.s32 0, %v603
          %v605 = vrot.slane %v600, %v604
          %v607 = vmul.f32 %v584, %v605
          %v608 = vmul.f32 %v585, %v605
          %v609 = vmul.f32 %v586, %v605
          %v610 = vmul.f32 %v587, %v605
          %v611 = vmul.f32 %v588, %v605
          %v612 = vmul.f32 %v589, %v605
          %v613 = vmul.f32 %v590, %v605
          %v614 = vmul.f32 %v591, %v605
          %v615 = vmul.f32 %v592, %v605
          %v616 = vmul.f32 %v593, %v605
          %v617 = vmul.f32 %v594, %v605
          %v618 = vmul.f32 %v595, %v605
          %v619 = vmul.f32 %v596, %v605
          %v620 = vmul.f32 %v597, %v605
          %v621 = vmul.f32 %v598, %v605
          %v622 = vmul.f32 %v599, %v605
          %v623 = vld [vmem:[#allocation2] sm:$0xff]
          %v624 = vld [vmem:[#allocation2 + $0x8] sm:$0xff]
          %v625 = vld [vmem:[#allocation2 + $0x10] sm:$0xff]
          %v626 = vld [vmem:[#allocation2 + $0x18] sm:$0xff]
          %v627 = vld [vmem:[#allocation2 + $0x20] sm:$0xff]
          %v628 = vld [vmem:[#allocation2 + $0x28] sm:$0xff]
          %v629 = vld [vmem:[#allocation2 + $0x30] sm:$0xff]
          %v630 = vld [vmem:[#allocation2 + $0x38] sm:$0xff]
          %v631 = vld [vmem:[#allocation2 + $0x40] sm:$0xff]
          %v632 = vld [vmem:[#allocation2 + $0x48] sm:$0xff]
          %v633 = vld [vmem:[#allocation2 + $0x50] sm:$0xff]
          %v634 = vld [vmem:[#allocation2 + $0x58] sm:$0xff]
          %v635 = vld [vmem:[#allocation2 + $0x60] sm:$0xff]
          %v636 = vld [vmem:[#allocation2 + $0x68] sm:$0xff]
          %v637 = vld [vmem:[#allocation2 + $0x70] sm:$0xff]
          %v638 = vld [vmem:[#allocation2 + $0x78] sm:$0xff]
          %639 = vmatprep.subr.mxu0 0.0
          %640 = vmatpush1.msra.mxu0 %v479
          %641 = vmatprep.subr.mxu0 0.0
          %642 = vmatpush1.msra.mxu0 %v478
          %643 = vmatprep.subr.mxu0 0.0
          %644 = vmatpush1.msra.mxu0 %v477
          %645 = vmatprep.subr.mxu0 0.0
          %646 = vmatpush1.msra.mxu0 %v476
          %647 = vmatprep.subr.mxu0 0.0
          %648 = vmatpush1.msra.mxu0 %v475
          %649 = vmatprep.subr.mxu0 0.0
          %650 = vmatpush1.msra.mxu0 %v474
          %651 = vmatprep.subr.mxu0 0.0
          %652 = vmatpush1.msra.mxu0 %v473
          %653 = vmatprep.subr.mxu0 0.0
          %654 = vmatpush1.msra.mxu0 %v472
          %655 = vmatprep.subr.mxu0 0.0
          %656 = vmatpush1.msra.mxu0 %v471
          %657 = vmatprep.subr.mxu0 0.0
          %658 = vmatpush1.msra.mxu0 %v470
          %659 = vmatprep.subr.mxu0 0.0
          %660 = vmatpush1.msra.mxu0 %v469
          %661 = vmatprep.subr.mxu0 0.0
          %662 = vmatpush1.msra.mxu0 %v468
          %663 = vmatprep.subr.mxu0 0.0
          %664 = vmatpush1.msra.mxu0 %v467
          %665 = vmatprep.subr.mxu0 0.0
          %666 = vmatpush1.msra.mxu0 %v466
          %667 = vmatprep.subr.mxu0 0.0
          %668 = vmatpush1.msra.mxu0 %v465
          %669 = vmatprep.subr.mxu0 0.0
          %670 = vmatpush1.msra.mxu0 %v464
          %671 = vmatprep.subr.mxu0 0.0
          %672 = vmatpush2.msra.mxu0 0.0
          %673 = vmatprep.subr.mxu0 0.0
          %674 = vmatpush2.msra.mxu0 0.0
          %675 = vmatprep.subr.mxu0 0.0
          %676 = vmatpush2.msra.mxu0 0.0
          %677 = vmatprep.subr.mxu0 0.0
          %678 = vmatpush2.msra.mxu0 0.0
          %679 = vmatprep.subr.mxu0 0.0
          %680 = vmatpush2.msra.mxu0 0.0
          %681 = vmatprep.subr.mxu0 0.0
          %682 = vmatpush2.msra.mxu0 0.0
          %683 = vmatprep.subr.mxu0 0.0
          %684 = vmatpush2.msra.mxu0 0.0
          %685 = vmatprep.subr.mxu0 0.0
          %686 = vmatpush2.msra.mxu0 0.0
          %687 = vmatprep.subr.mxu0 0.0
          %688 = vmatpush2.msra.mxu0 0.0
          %689 = vmatprep.subr.mxu0 0.0
          %690 = vmatpush2.msra.mxu0 0.0
          %691 = vmatprep.subr.mxu0 0.0
          %692 = vmatpush2.msra.mxu0 0.0
          %693 = vmatprep.subr.mxu0 0.0
          %694 = vmatpush2.msra.mxu0 0.0
          %695 = vmatprep.subr.mxu0 0.0
          %696 = vmatpush2.msra.mxu0 0.0
          %697 = vmatprep.subr.mxu0 0.0
          %698 = vmatpush2.msra.mxu0 0.0
          %699 = vmatprep.subr.mxu0 0.0
          %700 = vmatpush2.msra.mxu0 0.0
          %701 = vmatprep.subr.mxu0 0.0
          %702 = vmatpush2.msra.mxu0 0.0
          %703 = vmatprep.mubr.f32.mxu0 0.0
          %704 = vmatmul.mubr.f32.gmra.mxu0 %v607
          %v705 = vpop.f32.mrf.mxu0
          %v706 = vadd.f32 0.0, %v705
          %v707 = vpop.f32.mrf.mxu0
          %708 = vmatprep.mubr.f32.mxu0 0.0
          %709 = vmatmul.mubr.f32.gmra.mxu0 %v608
          %v710 = vpop.f32.mrf.mxu0
          %v711 = vadd.f32 0.0, %v710
          %v712 = vpop.f32.mrf.mxu0
          %713 = vmatprep.mubr.f32.mxu0 0.0
          %714 = vmatmul.mubr.f32.gmra.mxu0 %v609
          %v715 = vpop.f32.mrf.mxu0
          %v716 = vadd.f32 0.0, %v715
          %v717 = vpop.f32.mrf.mxu0
          %718 = vmatprep.mubr.f32.mxu0 0.0
          %719 = vmatmul.mubr.f32.gmra.mxu0 %v610
          %v720 = vpop.f32.mrf.mxu0
          %v721 = vadd.f32 0.0, %v720
          %v722 = vpop.f32.mrf.mxu0
          %723 = vmatprep.mubr.f32.mxu0 0.0
          %724 = vmatmul.mubr.f32.gmra.mxu0 %v611
          %v725 = vpop.f32.mrf.mxu0
          %v726 = vadd.f32 0.0, %v725
          %v727 = vpop.f32.mrf.mxu0
          %728 = vmatprep.mubr.f32.mxu0 0.0
          %729 = vmatmul.mubr.f32.gmra.mxu0 %v612
          %v730 = vpop.f32.mrf.mxu0
          %v731 = vadd.f32 0.0, %v730
          %v732 = vpop.f32.mrf.mxu0
          %733 = vmatprep.mubr.f32.mxu0 0.0
          %734 = vmatmul.mubr.f32.gmra.mxu0 %v613
          %v735 = vpop.f32.mrf.mxu0
          %v736 = vadd.f32 0.0, %v735
          %v737 = vpop.f32.mrf.mxu0
          %738 = vmatprep.mubr.f32.mxu0 0.0
          %739 = vmatmul.mubr.f32.gmra.mxu0 %v614
          %v740 = vpop.f32.mrf.mxu0
          %v741 = vadd.f32 0.0, %v740
          %v742 = vpop.f32.mrf.mxu0
          %743 = vmatprep.mubr.f32.mxu0 0.0
          %744 = vmatmul.mubr.f32.gmra.mxu0 %v615
          %v745 = vpop.f32.mrf.mxu0
          %v746 = vadd.f32 0.0, %v745
          %v747 = vpop.f32.mrf.mxu0
          %748 = vmatprep.mubr.f32.mxu0 0.0
          %749 = vmatmul.mubr.f32.gmra.mxu0 %v616
          %v750 = vpop.f32.mrf.mxu0
          %v751 = vadd.f32 0.0, %v750
          %v752 = vpop.f32.mrf.mxu0
          %753 = vmatprep.mubr.f32.mxu0 0.0
          %754 = vmatmul.mubr.f32.gmra.mxu0 %v617
          %v755 = vpop.f32.mrf.mxu0
          %v756 = vadd.f32 0.0, %v755
          %v757 = vpop.f32.mrf.mxu0
          %758 = vmatprep.mubr.f32.mxu0 0.0
          %759 = vmatmul.mubr.f32.gmra.mxu0 %v618
          %v760 = vpop.f32.mrf.mxu0
          %v761 = vadd.f32 0.0, %v760
          %v762 = vpop.f32.mrf.mxu0
          %763 = vmatprep.mubr.f32.mxu0 0.0
          %764 = vmatmul.mubr.f32.gmra.mxu0 %v619
          %v765 = vpop.f32.mrf.mxu0
          %v766 = vadd.f32 0.0, %v765
          %v767 = vpop.f32.mrf.mxu0
          %768 = vmatprep.mubr.f32.mxu0 0.0
          %769 = vmatmul.mubr.f32.gmra.mxu0 %v620
          %v770 = vpop.f32.mrf.mxu0
          %v771 = vadd.f32 0.0, %v770
          %v772 = vpop.f32.mrf.mxu0
          %773 = vmatprep.mubr.f32.mxu0 0.0
          %774 = vmatmul.mubr.f32.gmra.mxu0 %v621
          %v775 = vpop.f32.mrf.mxu0
          %v776 = vadd.f32 0.0, %v775
          %v777 = vpop.f32.mrf.mxu0
          %778 = vmatprep.mubr.f32.mxu0 0.0
          %779 = vmatmul.mubr.f32.gmra.mxu0 %v622
          %v780 = vpop.f32.mrf.mxu0
          %v781 = vadd.f32 0.0, %v780
          %v782 = vpop.f32.mrf.mxu0
          %783 = vdwg.mxu0
          %v784 = vadd.f32 %v623, %v706
          %v785 = vadd.f32 %v624, %v711
          %v786 = vadd.f32 %v625, %v716
          %v787 = vadd.f32 %v626, %v721
          %v788 = vadd.f32 %v627, %v726
          %v789 = vadd.f32 %v628, %v731
          %v790 = vadd.f32 %v629, %v736
          %v791 = vadd.f32 %v630, %v741
          %v792 = vadd.f32 %v631, %v746
          %v793 = vadd.f32 %v632, %v751
          %v794 = vadd.f32 %v633, %v756
          %v795 = vadd.f32 %v634, %v761
          %v796 = vadd.f32 %v635, %v766
          %v797 = vadd.f32 %v636, %v771
          %v798 = vadd.f32 %v637, %v776
          %v799 = vadd.f32 %v638, %v781
          %800 = vst [vmem:[#allocation2] sm:$0xff] %v784
          %801 = vst [vmem:[#allocation2 + $0x8] sm:$0xff] %v785
          %802 = vst [vmem:[#allocation2 + $0x10] sm:$0xff] %v786
          %803 = vst [vmem:[#allocation2 + $0x18] sm:$0xff] %v787
          %804 = vst [vmem:[#allocation2 + $0x20] sm:$0xff] %v788
          %805 = vst [vmem:[#allocation2 + $0x28] sm:$0xff] %v789
          %806 = vst [vmem:[#allocation2 + $0x30] sm:$0xff] %v790
          %807 = vst [vmem:[#allocation2 + $0x38] sm:$0xff] %v791
          %808 = vst [vmem:[#allocation2 + $0x40] sm:$0xff] %v792
          %809 = vst [vmem:[#allocation2 + $0x48] sm:$0xff] %v793
          %810 = vst [vmem:[#allocation2 + $0x50] sm:$0xff] %v794
          %811 = vst [vmem:[#allocation2 + $0x58] sm:$0xff] %v795
          %812 = vst [vmem:[#allocation2 + $0x60] sm:$0xff] %v796
          %813 = vst [vmem:[#allocation2 + $0x68] sm:$0xff] %v797
          %814 = vst [vmem:[#allocation2 + $0x70] sm:$0xff] %v798
          %815 = vst [vmem:[#allocation2 + $0x78] sm:$0xff] %v799
          %v816 = vld [vmem:[#allocation3] sm:$0xff]
          %v817 = vld [vmem:[#allocation3 + $0x8] sm:$0xff]
          %v818 = vld [vmem:[#allocation3 + $0x10] sm:$0xff]
          %v819 = vld [vmem:[#allocation3 + $0x18] sm:$0xff]
          %v820 = vld [vmem:[#allocation3 + $0x20] sm:$0xff]
          %v821 = vld [vmem:[#allocation3 + $0x28] sm:$0xff]
          %v822 = vld [vmem:[#allocation3 + $0x30] sm:$0xff]
          %v823 = vld [vmem:[#allocation3 + $0x38] sm:$0xff]
          %v824 = vld [vmem:[#allocation3 + $0x40] sm:$0xff]
          %v825 = vld [vmem:[#allocation3 + $0x48] sm:$0xff]
          %v826 = vld [vmem:[#allocation3 + $0x50] sm:$0xff]
          %v827 = vld [vmem:[#allocation3 + $0x58] sm:$0xff]
          %v828 = vld [vmem:[#allocation3 + $0x60] sm:$0xff]
          %v829 = vld [vmem:[#allocation3 + $0x68] sm:$0xff]
          %v830 = vld [vmem:[#allocation3 + $0x70] sm:$0xff]
          %v831 = vld [vmem:[#allocation3 + $0x78] sm:$0xff]
          %832 = vmatprep.subr.mxu0 0.0
          %833 = vmatpush1.msra.mxu0 %v479
          %834 = vmatprep.subr.mxu0 0.0
          %835 = vmatpush1.msra.mxu0 %v478
          %836 = vmatprep.subr.mxu0 0.0
          %837 = vmatpush1.msra.mxu0 %v477
          %838 = vmatprep.subr.mxu0 0.0
          %839 = vmatpush1.msra.mxu0 %v476
          %840 = vmatprep.subr.mxu0 0.0
          %841 = vmatpush1.msra.mxu0 %v475
          %842 = vmatprep.subr.mxu0 0.0
          %843 = vmatpush1.msra.mxu0 %v474
          %844 = vmatprep.subr.mxu0 0.0
          %845 = vmatpush1.msra.mxu0 %v473
          %846 = vmatprep.subr.mxu0 0.0
          %847 = vmatpush1.msra.mxu0 %v472
          %848 = vmatprep.subr.mxu0 0.0
          %849 = vmatpush1.msra.mxu0 %v471
          %850 = vmatprep.subr.mxu0 0.0
          %851 = vmatpush1.msra.mxu0 %v470
          %852 = vmatprep.subr.mxu0 0.0
          %853 = vmatpush1.msra.mxu0 %v469
          %854 = vmatprep.subr.mxu0 0.0
          %855 = vmatpush1.msra.mxu0 %v468
          %856 = vmatprep.subr.mxu0 0.0
          %857 = vmatpush1.msra.mxu0 %v467
          %858 = vmatprep.subr.mxu0 0.0
          %859 = vmatpush1.msra.mxu0 %v466
          %860 = vmatprep.subr.mxu0 0.0
          %861 = vmatpush1.msra.mxu0 %v465
          %862 = vmatprep.subr.mxu0 0.0
          %863 = vmatpush1.msra.mxu0 %v464
          %864 = vmatprep.subr.mxu0 0.0
          %865 = vmatpush2.msra.mxu0 0.0
          %866 = vmatprep.subr.mxu0 0.0
          %867 = vmatpush2.msra.mxu0 0.0
          %868 = vmatprep.subr.mxu0 0.0
          %869 = vmatpush2.msra.mxu0 0.0
          %870 = vmatprep.subr.mxu0 0.0
          %871 = vmatpush2.msra.mxu0 0.0
          %872 = vmatprep.subr.mxu0 0.0
          %873 = vmatpush2.msra.mxu0 0.0
          %874 = vmatprep.subr.mxu0 0.0
          %875 = vmatpush2.msra.mxu0 0.0
          %876 = vmatprep.subr.mxu0 0.0
          %877 = vmatpush2.msra.mxu0 0.0
          %878 = vmatprep.subr.mxu0 0.0
          %879 = vmatpush2.msra.mxu0 0.0
          %880 = vmatprep.subr.mxu0 0.0
          %881 = vmatpush2.msra.mxu0 0.0
          %882 = vmatprep.subr.mxu0 0.0
          %883 = vmatpush2.msra.mxu0 0.0
          %884 = vmatprep.subr.mxu0 0.0
          %885 = vmatpush2.msra.mxu0 0.0
          %886 = vmatprep.subr.mxu0 0.0
          %887 = vmatpush2.msra.mxu0 0.0
          %888 = vmatprep.subr.mxu0 0.0
          %889 = vmatpush2.msra.mxu0 0.0
          %890 = vmatprep.subr.mxu0 0.0
          %891 = vmatpush2.msra.mxu0 0.0
          %892 = vmatprep.subr.mxu0 0.0
          %893 = vmatpush2.msra.mxu0 0.0
          %894 = vmatprep.subr.mxu0 0.0
          %895 = vmatpush2.msra.mxu0 0.0
          %896 = vmatprep.mubr.f32.mxu0 0.0
          %897 = vmatmul.mubr.f32.gmra.mxu0 %v584
          %v898 = vpop.f32.mrf.mxu0
          %v899 = vadd.f32 0.0, %v898
          %v900 = vpop.f32.mrf.mxu0
          %901 = vmatprep.mubr.f32.mxu0 0.0
          %902 = vmatmul.mubr.f32.gmra.mxu0 %v585
          %v903 = vpop.f32.mrf.mxu0
          %v904 = vadd.f32 0.0, %v903
          %v905 = vpop.f32.mrf.mxu0
          %906 = vmatprep.mubr.f32.mxu0 0.0
          %907 = vmatmul.mubr.f32.gmra.mxu0 %v586
          %v908 = vpop.f32.mrf.mxu0
          %v909 = vadd.f32 0.0, %v908
          %v910 = vpop.f32.mrf.mxu0
          %911 = vmatprep.mubr.f32.mxu0 0.0
          %912 = vmatmul.mubr.f32.gmra.mxu0 %v587
          %v913 = vpop.f32.mrf.mxu0
          %v914 = vadd.f32 0.0, %v913
          %v915 = vpop.f32.mrf.mxu0
          %916 = vmatprep.mubr.f32.mxu0 0.0
          %917 = vmatmul.mubr.f32.gmra.mxu0 %v588
          %v918 = vpop.f32.mrf.mxu0
          %v919 = vadd.f32 0.0, %v918
          %v920 = vpop.f32.mrf.mxu0
          %921 = vmatprep.mubr.f32.mxu0 0.0
          %922 = vmatmul.mubr.f32.gmra.mxu0 %v589
          %v923 = vpop.f32.mrf.mxu0
          %v924 = vadd.f32 0.0, %v923
          %v925 = vpop.f32.mrf.mxu0
          %926 = vmatprep.mubr.f32.mxu0 0.0
          %927 = vmatmul.mubr.f32.gmra.mxu0 %v590
          %v928 = vpop.f32.mrf.mxu0
          %v929 = vadd.f32 0.0, %v928
          %v930 = vpop.f32.mrf.mxu0
          %931 = vmatprep.mubr.f32.mxu0 0.0
          %932 = vmatmul.mubr.f32.gmra.mxu0 %v591
          %v933 = vpop.f32.mrf.mxu0
          %v934 = vadd.f32 0.0, %v933
          %v935 = vpop.f32.mrf.mxu0
          %936 = vmatprep.mubr.f32.mxu0 0.0
          %937 = vmatmul.mubr.f32.gmra.mxu0 %v592
          %v938 = vpop.f32.mrf.mxu0
          %v939 = vadd.f32 0.0, %v938
          %v940 = vpop.f32.mrf.mxu0
          %941 = vmatprep.mubr.f32.mxu0 0.0
          %942 = vmatmul.mubr.f32.gmra.mxu0 %v593
          %v943 = vpop.f32.mrf.mxu0
          %v944 = vadd.f32 0.0, %v943
          %v945 = vpop.f32.mrf.mxu0
          %946 = vmatprep.mubr.f32.mxu0 0.0
          %947 = vmatmul.mubr.f32.gmra.mxu0 %v594
          %v948 = vpop.f32.mrf.mxu0
          %v949 = vadd.f32 0.0, %v948
          %v950 = vpop.f32.mrf.mxu0
          %951 = vmatprep.mubr.f32.mxu0 0.0
          %952 = vmatmul.mubr.f32.gmra.mxu0 %v595
          %v953 = vpop.f32.mrf.mxu0
          %v954 = vadd.f32 0.0, %v953
          %v955 = vpop.f32.mrf.mxu0
          %956 = vmatprep.mubr.f32.mxu0 0.0
          %957 = vmatmul.mubr.f32.gmra.mxu0 %v596
          %v958 = vpop.f32.mrf.mxu0
          %v959 = vadd.f32 0.0, %v958
          %v960 = vpop.f32.mrf.mxu0
          %961 = vmatprep.mubr.f32.mxu0 0.0
          %962 = vmatmul.mubr.f32.gmra.mxu0 %v597
          %v963 = vpop.f32.mrf.mxu0
          %v964 = vadd.f32 0.0, %v963
          %v965 = vpop.f32.mrf.mxu0
          %966 = vmatprep.mubr.f32.mxu0 0.0
          %967 = vmatmul.mubr.f32.gmra.mxu0 %v598
          %v968 = vpop.f32.mrf.mxu0
          %v969 = vadd.f32 0.0, %v968
          %v970 = vpop.f32.mrf.mxu0
          %971 = vmatprep.mubr.f32.mxu0 0.0
          %972 = vmatmul.mubr.f32.gmra.mxu0 %v599
          %v973 = vpop.f32.mrf.mxu0
          %v974 = vadd.f32 0.0, %v973
          %v975 = vpop.f32.mrf.mxu0
          %976 = vdwg.mxu0
          %v977 = vadd.f32 %v816, %v899
          %v978 = vadd.f32 %v817, %v904
          %v979 = vadd.f32 %v818, %v909
          %v980 = vadd.f32 %v819, %v914
          %v981 = vadd.f32 %v820, %v919
          %v982 = vadd.f32 %v821, %v924
          %v983 = vadd.f32 %v822, %v929
          %v984 = vadd.f32 %v823, %v934
          %v985 = vadd.f32 %v824, %v939
          %v986 = vadd.f32 %v825, %v944
          %v987 = vadd.f32 %v826, %v949
          %v988 = vadd.f32 %v827, %v954
          %v989 = vadd.f32 %v828, %v959
          %v990 = vadd.f32 %v829, %v964
          %v991 = vadd.f32 %v830, %v969
          %v992 = vadd.f32 %v831, %v974
          %993 = vst [vmem:[#allocation3] sm:$0xff] %v977
          %994 = vst [vmem:[#allocation3 + $0x8] sm:$0xff] %v978
          %995 = vst [vmem:[#allocation3 + $0x10] sm:$0xff] %v979
          %996 = vst [vmem:[#allocation3 + $0x18] sm:$0xff] %v980
          %997 = vst [vmem:[#allocation3 + $0x20] sm:$0xff] %v981
          %998 = vst [vmem:[#allocation3 + $0x28] sm:$0xff] %v982
          %999 = vst [vmem:[#allocation3 + $0x30] sm:$0xff] %v983
          %1000 = vst [vmem:[#allocation3 + $0x38] sm:$0xff] %v984
          %1001 = vst [vmem:[#allocation3 + $0x40] sm:$0xff] %v985
          %1002 = vst [vmem:[#allocation3 + $0x48] sm:$0xff] %v986
          %1003 = vst [vmem:[#allocation3 + $0x50] sm:$0xff] %v987
          %1004 = vst [vmem:[#allocation3 + $0x58] sm:$0xff] %v988
          %1005 = vst [vmem:[#allocation3 + $0x60] sm:$0xff] %v989
          %1006 = vst [vmem:[#allocation3 + $0x68] sm:$0xff] %v990
          %1007 = vst [vmem:[#allocation3 + $0x70] sm:$0xff] %v991
          %1008 = vst [vmem:[#allocation3 + $0x78] sm:$0xff] %v992
        $region56: #{tpu_custom_call.1} parent=35 // pred_fallthru
          _
        %p1009 = scmp.eq.s32.totalorder %s37, 15
        // Predicated region
        $region57: #{tpu_custom_call.1} parent=35 // pred_check
          %p1010 = pneg %p1009
        $region58: #{tpu_custom_call.1} parent=35 // pred_check_branch
          %1012 = sbr.rel (%p1010) target = $region60
        $region59: #{tpu_custom_call.1} parent=35 // pred_region
          %v1013 = vld [vmem:[#allocation2] sm:$0xff]
          %v1014 = vld [vmem:[#allocation2 + $0x8] sm:$0xff]
          %v1015 = vld [vmem:[#allocation2 + $0x10] sm:$0xff]
          %v1016 = vld [vmem:[#allocation2 + $0x18] sm:$0xff]
          %v1017 = vld [vmem:[#allocation2 + $0x20] sm:$0xff]
          %v1018 = vld [vmem:[#allocation2 + $0x28] sm:$0xff]
          %v1019 = vld [vmem:[#allocation2 + $0x30] sm:$0xff]
          %v1020 = vld [vmem:[#allocation2 + $0x38] sm:$0xff]
          %v1021 = vld [vmem:[#allocation2 + $0x40] sm:$0xff]
          %v1022 = vld [vmem:[#allocation2 + $0x48] sm:$0xff]
          %v1023 = vld [vmem:[#allocation2 + $0x50] sm:$0xff]
          %v1024 = vld [vmem:[#allocation2 + $0x58] sm:$0xff]
          %v1025 = vld [vmem:[#allocation2 + $0x60] sm:$0xff]
          %v1026 = vld [vmem:[#allocation2 + $0x68] sm:$0xff]
          %v1027 = vld [vmem:[#allocation2 + $0x70] sm:$0xff]
          %v1028 = vld [vmem:[#allocation2 + $0x78] sm:$0xff]
          %v1029 = vld [vmem:[#allocation3] sm:$0xff]
          %v1030 = vld [vmem:[#allocation3 + $0x8] sm:$0xff]
          %v1031 = vld [vmem:[#allocation3 + $0x10] sm:$0xff]
          %v1032 = vld [vmem:[#allocation3 + $0x18] sm:$0xff]
          %v1033 = vld [vmem:[#allocation3 + $0x20] sm:$0xff]
          %v1034 = vld [vmem:[#allocation3 + $0x28] sm:$0xff]
          %v1035 = vld [vmem:[#allocation3 + $0x30] sm:$0xff]
          %v1036 = vld [vmem:[#allocation3 + $0x38] sm:$0xff]
          %v1037 = vld [vmem:[#allocation3 + $0x40] sm:$0xff]
          %v1038 = vld [vmem:[#allocation3 + $0x48] sm:$0xff]
          %v1039 = vld [vmem:[#allocation3 + $0x50] sm:$0xff]
          %v1040 = vld [vmem:[#allocation3 + $0x58] sm:$0xff]
          %v1041 = vld [vmem:[#allocation3 + $0x60] sm:$0xff]
          %v1042 = vld [vmem:[#allocation3 + $0x68] sm:$0xff]
          %v1043 = vld [vmem:[#allocation3 + $0x70] sm:$0xff]
          %v1044 = vld [vmem:[#allocation3 + $0x78] sm:$0xff]
          %v1045 = vadd.f32 %v1029, 1e-08
          %v1046 = vadd.f32 %v1030, 1e-08
          %v1047 = vadd.f32 %v1031, 1e-08
          %v1048 = vadd.f32 %v1032, 1e-08
          %v1049 = vadd.f32 %v1033, 1e-08
          %v1050 = vadd.f32 %v1034, 1e-08
          %v1051 = vadd.f32 %v1035, 1e-08
          %v1052 = vadd.f32 %v1036, 1e-08
          %v1053 = vadd.f32 %v1037, 1e-08
          %v1054 = vadd.f32 %v1038, 1e-08
          %v1055 = vadd.f32 %v1039, 1e-08
          %v1056 = vadd.f32 %v1040, 1e-08
          %v1057 = vadd.f32 %v1041, 1e-08
          %v1058 = vadd.f32 %v1042, 1e-08
          %v1059 = vadd.f32 %v1043, 1e-08
          %v1060 = vadd.f32 %v1044, 1e-08
          %v1061 = vrcp.pop %v1045
          %v1062 = vrcp.pop %v1046
          %v1063 = vrcp.pop %v1047
          %v1064 = vrcp.pop %v1048
          %v1065 = vrcp.pop %v1049
          %v1066 = vrcp.pop %v1050
          %v1067 = vrcp.pop %v1051
          %v1068 = vrcp.pop %v1052
          %v1069 = vrcp.pop %v1053
          %v1070 = vrcp.pop %v1054
          %v1071 = vrcp.pop %v1055
          %v1072 = vrcp.pop %v1056
          %v1073 = vrcp.pop %v1057
          %v1074 = vrcp.pop %v1058
          %v1075 = vrcp.pop %v1059
          %v1076 = vrcp.pop %v1060
          %v1077 = vmul.f32 %v1013, %v1061
          %v1078 = vmul.f32 %v1014, %v1062
          %v1079 = vmul.f32 %v1015, %v1063
          %v1080 = vmul.f32 %v1016, %v1064
          %v1081 = vmul.f32 %v1017, %v1065
          %v1082 = vmul.f32 %v1018, %v1066
          %v1083 = vmul.f32 %v1019, %v1067
          %v1084 = vmul.f32 %v1020, %v1068
          %v1085 = vmul.f32 %v1021, %v1069
          %v1086 = vmul.f32 %v1022, %v1070
          %v1087 = vmul.f32 %v1023, %v1071
          %v1088 = vmul.f32 %v1024, %v1072
          %v1089 = vmul.f32 %v1025, %v1073
          %v1090 = vmul.f32 %v1026, %v1074
          %v1091 = vmul.f32 %v1027, %v1075
          %v1092 = vmul.f32 %v1028, %v1076
          %1093 = vst [vmem:[%s390] sm:$0xff] %v1077
          %1094 = vst [vmem:[%s390 + $0x8] sm:$0xff] %v1078
          %1095 = vst [vmem:[%s390 + $0x10] sm:$0xff] %v1079
          %1096 = vst [vmem:[%s390 + $0x18] sm:$0xff] %v1080
          %1097 = vst [vmem:[%s390 + $0x20] sm:$0xff] %v1081
          %1098 = vst [vmem:[%s390 + $0x28] sm:$0xff] %v1082
          %1099 = vst [vmem:[%s390 + $0x30] sm:$0xff] %v1083
          %1100 = vst [vmem:[%s390 + $0x38] sm:$0xff] %v1084
          %1101 = vst [vmem:[%s390 + $0x40] sm:$0xff] %v1085
          %1102 = vst [vmem:[%s390 + $0x48] sm:$0xff] %v1086
          %1103 = vst [vmem:[%s390 + $0x50] sm:$0xff] %v1087
          %1104 = vst [vmem:[%s390 + $0x58] sm:$0xff] %v1088
          %1105 = vst [vmem:[%s390 + $0x60] sm:$0xff] %v1089
          %1106 = vst [vmem:[%s390 + $0x68] sm:$0xff] %v1090
          %1107 = vst [vmem:[%s390 + $0x70] sm:$0xff] %v1091
          %1108 = vst [vmem:[%s390 + $0x78] sm:$0xff] %v1092
        $region60: #{tpu_custom_call.1} parent=35 // pred_fallthru
          _
        %s1109 = sand.u32 %s211, 1
        %s1110 = scalar_lea.sflag [#allocation9], %s1109
        %s1111 = sand.u32 %s211, 1
        %s1112 = smul.addr %s1111, 128
        %s1113 = scalar_lea.vmem [#allocation13], %s1112
        // Predicated region
        $region61: #{tpu_custom_call.1} parent=35 // pred_check
          %p1114 = pneg %p221
        $region62: #{tpu_custom_call.1} parent=35 // pred_check_branch
          %1116 = sbr.rel (%p1114) target = $region64
        $region63: #{tpu_custom_call.1} parent=35 // pred_region
          %s1117 = smul.u32 16, %s36
          %s1119 = ssub.s32 2048, 2048
          %1120 = vsyncadd %s1110, %s1119
          %s1121 = smul.addr %s1117, 128
          %s1122 = scalar_lea.hbm %s6, %s1121
          %s1123 = sshll.u32 %s1113, 4
          %s1124 = int_to_ptr.vmem [resolvable:$true] %s1123
          %1129 = dma.vmem_to_hbm [thread:$0]  %s1124, 2048, %s1122, %s1110, 128, 128, 8
        $region64: #{tpu_custom_call.1} parent=35 // pred_fallthru
          _
      $region36: #{tpu_custom_call.1} parent=5 // pred_fallthru
        _
      %p1130 = scmp.le.s32.totalorder 2, %s27
      // Predicated region
      $region65: #{tpu_custom_call.1} parent=5 // pred_check
        %p1131 = pneg %p1130
      $region66: #{tpu_custom_call.1} parent=5 // pred_check_branch
        %1133 = sbr.rel (%p1131) target = $region68
      $region67: #{tpu_custom_call.1} parent=5 // pred_region
        %s1134 = ssub.s32 %s27, 2
        // Predicated region
        $region69: #{tpu_custom_call.1} parent=67 // pred_check
          %p1135 = pneg %p227
        $region70: #{tpu_custom_call.1} parent=67 // pred_check_branch
          %1137 = sbr.rel (%p1135) target = $region72
        $region71: #{tpu_custom_call.1} parent=67 // pred_region
          %s1138 = sand.u32 %s212, 1
          %s1139 = scalar_lea.sflag [#allocation9], %s1138
          %s1140 = sand.u32 %s212, 1
          %s1141 = smul.addr %s1140, 128
          %s1142 = scalar_lea.vmem [#allocation13], %s1141
          %1143 = dma.done %s1139, 2048
        $region72: #{tpu_custom_call.1} parent=67 // pred_fallthru
          _
      $region68: #{tpu_custom_call.1} parent=5 // pred_fallthru
        _
    $region6: #{tpu_custom_call.1} parent=1 // loop_footer
      %s31 = sadd.s32 1, %s27
    $region7: #{tpu_custom_call.1} parent=1 // loop_footer_branch
      %26 = sbr.rel target = $region3
    $region8: #{tpu_custom_call.1} parent=1 // loop_exit
      _
    %1144 = vsyncpa [#allocation8], 1
    %s1145 = scalar_lea.sflag [#allocation8], 1
    %1146 = vsyncpa %s1145, 1
    %1147 = vsyncpa [#allocation11], 1
    %s1148 = scalar_lea.sflag [#allocation11], 1
    %1149 = vsyncpa %s1148, 1
    %1150 = vsyncpa [#allocation9], 1
    %s1151 = scalar_lea.sflag [#allocation9], 1
    %1152 = vsyncpa %s1151, 1

</llo_original>
